<compile_context>
chip_gen: v7x
topology: tpu7x:2x2x1
jax: 0.10.0
libtpu: 0.0.40
codegen_flags: <defaults>
</compile_context>

<pallas_src>
import functools

import jax
import jax.numpy as jnp
from jax import lax
from jax.experimental import pallas as pl
from jax.experimental.pallas import tpu as pltpu


def _round_up(n, m):
    return ((n + m - 1) // m) * m


def idsmlp_kernel(x_ref, w1_ref, b1_ref, w2_ref, b2_ref, w3_ref, b3_ref, o_ref,
                  *, chunk, nchunks):
    # Weights / biases are tiny (~17 KiB) and VMEM-resident across the whole grid.
    w1 = w1_ref[...]
    b1 = b1_ref[...]
    w2 = w2_ref[...]
    b2 = b2_ref[...]
    w3 = w3_ref[...]
    b3 = b3_ref[...]

    def mlp_rows(xs):
        # Upcast the bf16 input stream in-vreg; all accumulation is f32.
        xs = xs.astype(jnp.float32)
        h1 = jnp.dot(xs, w1, preferred_element_type=jnp.float32)
        h1 = jnp.maximum(h1 + b1, 0.0)
        h2 = jnp.dot(h1, w2, preferred_element_type=jnp.float32)
        h2 = jnp.maximum(h2 + b2, 0.0)
        out = jnp.dot(h2, w3, preferred_element_type=jnp.float32) + b3
        return out.astype(o_ref.dtype)

    if nchunks == 1:
        o_ref[...] = mlp_rows(x_ref[...])
    else:
        # Sub-chunk the batch tile so intermediates stay close to vreg-sized instead
        # of spilling as large VMEM temporaries between the three matmuls.
        def body(i, carry):
            r = pl.multiple_of(i * chunk, chunk)
            o_ref[pl.ds(r, chunk), :] = mlp_rows(x_ref[pl.ds(r, chunk), :])
            return carry

        lax.fori_loop(0, nchunks, body, 0, unroll=True)


def idsmlp_forward(x, params, *, block_rows=1024, sub_chunk=256,
                   input_dtype=jnp.bfloat16):
    """x: (B, input_dim) float32; params: dict of transposed weights and biases."""
    w1, b1 = params["w1"], params["b1"]
    w2, b2 = params["w2"], params["b2"]
    w3, b3 = params["w3"], params["b3"]

    B, input_dim = x.shape
    hidden = w1.shape[1]
    hidden2 = w2.shape[1]
    num_classes = w3.shape[1]

    # Batch tile: always a multiple of 8 sublanes; pad B so the tile divides exactly
    # (zero-padded tail rows, outputs sliced off below). 1024 rows * 32 cols bf16
    # double-buffered is ~128 KiB -> comfortably inside v7x's 32 MiB scoped VMEM.
    if B <= block_rows:
        tb = max(8, _round_up(B, 8))
    else:
        tb = block_rows  # multiple of 8 and of sub_chunk
    b_pad = _round_up(B, tb)

    x = x.astype(input_dtype)
    if b_pad != B:
        x = jnp.pad(x, ((0, b_pad - B), (0, 0)))

    if tb > sub_chunk and tb % sub_chunk == 0:
        chunk, nchunks = sub_chunk, tb // sub_chunk
    else:
        chunk, nchunks = tb, 1

    grid = (b_pad // tb,)

    def full2d(a):
        return pl.BlockSpec(a.shape, lambda i: (0, 0))

    x_bytes = jnp.dtype(input_dtype).itemsize
    w_bytes = sum(int(a.size) * a.dtype.itemsize
                  for a in (w1, b1, w2, b2, w3, b3))
    cost = pl.CostEstimate(
        flops=2 * b_pad * (input_dim * hidden + hidden * hidden2
                           + hidden2 * num_classes),
        transcendentals=0,
        bytes_accessed=b_pad * input_dim * x_bytes
                       + b_pad * num_classes * 4 + w_bytes,
    )

    kernel = functools.partial(idsmlp_kernel, chunk=chunk, nchunks=nchunks)

    out = pl.pallas_call(
        kernel,
        out_shape=jax.ShapeDtypeStruct((b_pad, num_classes), jnp.float32),
        grid=grid,
        in_specs=[
            pl.BlockSpec((tb, input_dim), lambda i: (i, 0)),   # streamed x tiles
            full2d(w1), full2d(b1),
            full2d(w2), full2d(b2),
            full2d(w3), full2d(b3),
        ],
        out_specs=pl.BlockSpec((tb, num_classes), lambda i: (i, 0)),
        compiler_params=pltpu.CompilerParams(
            dimension_semantics=("parallel",),   # megacore sharding on v7x
        ),
        cost_estimate=cost,
    )(x, w1, b1, w2, b2, w3, b3)

    return out[:B] if b_pad != B else out


def init_params(key, input_dim, hidden_dim=64, num_classes=2):
    """Deterministic init mimicking nn.Linear's uniform(-1/sqrt(fan_in), 1/sqrt(fan_in)).
    Weights stored pre-transposed: (in_features, out_features)."""
    ks = jax.random.split(key, 6)

    def linear(kw, kb, fan_in, fan_out):
        bound = 1.0 / jnp.sqrt(jnp.float32(fan_in))
        w = jax.random.uniform(kw, (fan_in, fan_out), jnp.float32, -bound, bound)
        b = jax.random.uniform(kb, (1, fan_out), jnp.float32, -bound, bound)
        return w, b

    w1, b1 = linear(ks[0], ks[1], input_dim, hidden_dim)
    w2, b2 = linear(ks[2], ks[3], hidden_dim, hidden_dim // 2)
    w3, b3 = linear(ks[4], ks[5], hidden_dim // 2, num_classes)
    return {"w1": w1, "b1": b1, "w2": w2, "b2": b2, "w3": w3, "b3": b3}


def idsmlp_reference(x, p, input_dtype=jnp.bfloat16):
    """Pure-JAX reference applying the same input quantization as the kernel."""
    xq = x.astype(input_dtype).astype(jnp.float32)
    hp = jax.lax.Precision.HIGHEST
    h1 = jnp.maximum(jnp.dot(xq, p["w1"], precision=hp) + p["b1"], 0.0)
    h2 = jnp.maximum(jnp.dot(h1, p["w2"], precision=hp) + p["b2"], 0.0)
    return jnp.dot(h2, p["w3"], precision=hp) + p["b3"]


if __name__ == "__main__":
    key = jax.random.PRNGKey(0)
    k_params, k_x1, k_x2 = jax.random.split(key, 3)

    input_dim, hidden_dim, num_classes = 32, 64, 2
    params = init_params(k_params, input_dim, hidden_dim, num_classes)

    # Small, module-consistent shape (single grid step, no sub-chunking).
    batch_small = 8
    x_small = jax.random.normal(k_x1, (batch_small, input_dim), jnp.float32)
    out_small = jax.block_until_ready(idsmlp_forward(x_small, params))
    ref_small = idsmlp_reference(x_small, params)
    assert out_small.shape == (batch_small, num_classes)
    assert jnp.allclose(out_small, ref_small, atol=1e-3, rtol=1e-3), \
        "small-batch mismatch vs reference"

    # Larger batch exercising the batch grid, the sub-chunk loop and tail padding
    # (2304 is not a multiple of the 1024-row tile).
    batch_big = 2304
    x_big = jax.random.normal(k_x2, (batch_big, input_dim), jnp.float32)
    out_big = jax.block_until_ready(idsmlp_forward(x_big, params))
    ref_big = idsmlp_reference(x_big, params)
    assert out_big.shape == (batch_big, num_classes)
    assert jnp.allclose(out_big, ref_big, atol=1e-3, rtol=1e-3), \
        "large-batch mismatch vs reference"

    print("KERNEL_OK")
</pallas_src>

<mosaic_0001>
module attributes {stable_mosaic.version = 11 : i64} {
  func.func @idsmlp_kernel(%arg0: i32, %arg1: memref<8x32xbf16, #tpu.memory_space<vmem>>, %arg2: memref<32x64xf32, #tpu.memory_space<vmem>>, %arg3: memref<1x64xf32, #tpu.memory_space<vmem>>, %arg4: memref<64x32xf32, #tpu.memory_space<vmem>>, %arg5: memref<1x32xf32, #tpu.memory_space<vmem>>, %arg6: memref<32x2xf32, #tpu.memory_space<vmem>>, %arg7: memref<1x2xf32, #tpu.memory_space<vmem>>, %arg8: memref<8x2xf32, #tpu.memory_space<vmem>>) attributes {dimension_semantics = [#tpu.dimension_semantics<parallel>], iteration_bounds = array<i64: 1>, scalar_prefetch = 0 : i64, scratch_operands = 0 : i64, tpu.core_type = #tpu.core_type<tc>, window_params = [{transform_indices = @transform_0, window_bounds = array<i64: 8, 32>}, {pipeline_mode = #tpu.pipeline_mode<synchronous>, transform_indices = @transform_1, window_bounds = array<i64: 32, 64>}, {pipeline_mode = #tpu.pipeline_mode<synchronous>, transform_indices = @transform_2, window_bounds = array<i64: 1, 64>}, {pipeline_mode = #tpu.pipeline_mode<synchronous>, transform_indices = @transform_3, window_bounds = array<i64: 64, 32>}, {pipeline_mode = #tpu.pipeline_mode<synchronous>, transform_indices = @transform_4, window_bounds = array<i64: 1, 32>}, {pipeline_mode = #tpu.pipeline_mode<synchronous>, transform_indices = @transform_5, window_bounds = array<i64: 32, 2>}, {pipeline_mode = #tpu.pipeline_mode<synchronous>, transform_indices = @transform_6, window_bounds = array<i64: 1, 2>}, {transform_indices = @transform_7, window_bounds = array<i64: 8, 2>}]} {
    %c0 = arith.constant 0 : index
    %c0_0 = arith.constant 0 : index
    %0 = vector.load %arg2[%c0, %c0_0] : memref<32x64xf32, #tpu.memory_space<vmem>>, vector<32x64xf32>
    %c0_1 = arith.constant 0 : index
    %c0_2 = arith.constant 0 : index
    %1 = vector.load %arg3[%c0_1, %c0_2] : memref<1x64xf32, #tpu.memory_space<vmem>>, vector<1x64xf32>
    %c0_3 = arith.constant 0 : index
    %c0_4 = arith.constant 0 : index
    %2 = vector.load %arg4[%c0_3, %c0_4] : memref<64x32xf32, #tpu.memory_space<vmem>>, vector<64x32xf32>
    %c0_5 = arith.constant 0 : index
    %c0_6 = arith.constant 0 : index
    %3 = vector.load %arg5[%c0_5, %c0_6] : memref<1x32xf32, #tpu.memory_space<vmem>>, vector<1x32xf32>
    %c0_7 = arith.constant 0 : index
    %c0_8 = arith.constant 0 : index
    %4 = vector.load %arg6[%c0_7, %c0_8] : memref<32x2xf32, #tpu.memory_space<vmem>>, vector<32x2xf32>
    %c0_9 = arith.constant 0 : index
    %c0_10 = arith.constant 0 : index
    %5 = vector.load %arg7[%c0_9, %c0_10] : memref<1x2xf32, #tpu.memory_space<vmem>>, vector<1x2xf32>
    %c0_11 = arith.constant 0 : index
    %c0_12 = arith.constant 0 : index
    %6 = vector.load %arg1[%c0_11, %c0_12] : memref<8x32xbf16, #tpu.memory_space<vmem>>, vector<8x32xbf16>
    %7 = arith.extf %6 : vector<8x32xbf16> to vector<8x32xf32>
    %cst = arith.constant dense<0.000000e+00> : vector<8x64xf32>
    %8 = tpu.matmul %7, %0, %cst {dimension_numbers = #tpu.dot_dimension_numbers<[1], [0], [0], [1], [0, 0, 1, 1], [], []>} : vector<8x32xf32>, vector<32x64xf32>, vector<8x64xf32> -> vector<8x64xf32>
    %9 = vector.broadcast %1 : vector<1x64xf32> to vector<8x64xf32>
    %10 = arith.addf %8, %9 : vector<8x64xf32>
    %cst_13 = arith.constant 0.000000e+00 : f32
    %11 = vector.broadcast %cst_13 : f32 to vector<8x64xf32>
    %12 = arith.maximumf %10, %11 : vector<8x64xf32>
    %cst_14 = arith.constant dense<0.000000e+00> : vector<8x32xf32>
    %13 = tpu.matmul %12, %2, %cst_14 {dimension_numbers = #tpu.dot_dimension_numbers<[1], [0], [0], [1], [0, 0, 1, 1], [], []>} : vector<8x64xf32>, vector<64x32xf32>, vector<8x32xf32> -> vector<8x32xf32>
    %14 = vector.broadcast %3 : vector<1x32xf32> to vector<8x32xf32>
    %15 = arith.addf %13, %14 : vector<8x32xf32>
    %cst_15 = arith.constant 0.000000e+00 : f32
    %16 = vector.broadcast %cst_15 : f32 to vector<8x32xf32>
    %17 = arith.maximumf %15, %16 : vector<8x32xf32>
    %cst_16 = arith.constant dense<0.000000e+00> : vector<8x2xf32>
    %18 = tpu.matmul %17, %4, %cst_16 {dimension_numbers = #tpu.dot_dimension_numbers<[1], [0], [0], [1], [0, 0, 1, 1], [], []>} : vector<8x32xf32>, vector<32x2xf32>, vector<8x2xf32> -> vector<8x2xf32>
    %19 = vector.broadcast %5 : vector<1x2xf32> to vector<8x2xf32>
    %20 = arith.addf %18, %19 : vector<8x2xf32>
    %c0_17 = arith.constant 0 : index
    %c0_18 = arith.constant 0 : index
    %21 = vector.load %arg8[%c0_17, %c0_18] : memref<8x2xf32, #tpu.memory_space<vmem>>, vector<8x2xf32>
    tpu.vector_store %arg8[%c0_17, %c0_18], %20 {strides = array<i32>} : memref<8x2xf32, #tpu.memory_space<vmem>>, vector<8x2xf32>,
    return
  }
  func.func @transform_0(%arg0: i32) -> (i32, i32) {
    %c0_i32 = arith.constant 0 : i32
    %c0_i32_0 = arith.constant 0 : i32
    return %arg0, %c0_i32 : i32, i32
  }
  func.func @transform_1(%arg0: i32) -> (i32, i32) {
    %c0_i32 = arith.constant 0 : i32
    %c0_i32_0 = arith.constant 0 : i32
    %c0_i32_1 = arith.constant 0 : i32
    return %c0_i32, %c0_i32_0 : i32, i32
  }
  func.func @transform_2(%arg0: i32) -> (i32, i32) {
    %c0_i32 = arith.constant 0 : i32
    %c0_i32_0 = arith.constant 0 : i32
    %c0_i32_1 = arith.constant 0 : i32
    return %c0_i32, %c0_i32_0 : i32, i32
  }
  func.func @transform_3(%arg0: i32) -> (i32, i32) {
    %c0_i32 = arith.constant 0 : i32
    %c0_i32_0 = arith.constant 0 : i32
    %c0_i32_1 = arith.constant 0 : i32
    return %c0_i32, %c0_i32_0 : i32, i32
  }
  func.func @transform_4(%arg0: i32) -> (i32, i32) {
    %c0_i32 = arith.constant 0 : i32
    %c0_i32_0 = arith.constant 0 : i32
    %c0_i32_1 = arith.constant 0 : i32
    return %c0_i32, %c0_i32_0 : i32, i32
  }
  func.func @transform_5(%arg0: i32) -> (i32, i32) {
    %c0_i32 = arith.constant 0 : i32
    %c0_i32_0 = arith.constant 0 : i32
    %c0_i32_1 = arith.constant 0 : i32
    return %c0_i32, %c0_i32_0 : i32, i32
  }
  func.func @transform_6(%arg0: i32) -> (i32, i32) {
    %c0_i32 = arith.constant 0 : i32
    %c0_i32_0 = arith.constant 0 : i32
    %c0_i32_1 = arith.constant 0 : i32
    return %c0_i32, %c0_i32_0 : i32, i32
  }
  func.func @transform_7(%arg0: i32) -> (i32, i32) {
    %c0_i32 = arith.constant 0 : i32
    %c0_i32_0 = arith.constant 0 : i32
    return %arg0, %c0_i32 : i32, i32
  }
}

</mosaic_0001>

<llo_original>
// kernel: tpu_custom_call.1
$region0: #{tpu_custom_call.1}
  #allocation0 [shape = 'u32[]', space=smem, size = 0x4, offset = 0x4, fixed_abs, tag = 'smem constant byte address 0x4 - core index']
  #allocation1 [shape = 'u32[144,128]{1,0:T(1,128)}', space=vmem, size = 0x12000, scoped, tag = 'internal scratch']
  %s0 = inlined_call_operand.vmem [shape: bf16[8,32], index: 0, kind: input, shape index: {}]
  %s1 = inlined_call_operand.vmem [shape: f32[32,64], index: 1, kind: input, shape index: {}]
  %s2 = inlined_call_operand.vmem [shape: f32[1,64], index: 2, kind: input, shape index: {}]
  %s3 = inlined_call_operand.vmem [shape: f32[64,32], index: 3, kind: input, shape index: {}]
  %s4 = inlined_call_operand.vmem [shape: f32[1,32], index: 4, kind: input, shape index: {}]
  %s5 = inlined_call_operand.vmem [shape: f32[32,2], index: 5, kind: input, shape index: {}]
  %s6 = inlined_call_operand.vmem [shape: f32[1,2], index: 6, kind: input, shape index: {}]
  %s7 = inlined_call_operand.vmem [shape: f32[8,2], index: 7, kind: output, shape index: {}]
  %s8 = sld [smem:[#allocation0]]
  $region38: #{tpu_custom_call.1} parent=0
    _
  %s10 = ssub.s32 1, %s8
  %s11 = scalar_select 0, %s10, %s8
  // Predicated region
  $region2: #{tpu_custom_call.1} parent=0 // pred_check
    _
  $region3: #{tpu_custom_call.1} parent=0 // pred_check_branch
    %13 = sbr.rel (0) target = $region5
  $region4: #{tpu_custom_call.1} parent=0 // pred_region
    _
  $region5: #{tpu_custom_call.1} parent=0 // pred_fallthru
    _
  // Predicated region
  $region6: #{tpu_custom_call.1} parent=0 // pred_check
    _
  $region7: #{tpu_custom_call.1} parent=0 // pred_check_branch
    %15 = sbr.rel (0) target = $region9
  $region8: #{tpu_custom_call.1} parent=0 // pred_region
    _
  $region9: #{tpu_custom_call.1} parent=0 // pred_fallthru
    _
  // Predicated region
  $region10: #{tpu_custom_call.1} parent=0 // pred_check
    _
  $region11: #{tpu_custom_call.1} parent=0 // pred_check_branch
    %17 = sbr.rel (0) target = $region13
  $region12: #{tpu_custom_call.1} parent=0 // pred_region
    _
  $region13: #{tpu_custom_call.1} parent=0 // pred_fallthru
    _
  // Predicated region
  $region14: #{tpu_custom_call.1} parent=0 // pred_check
    _
  $region15: #{tpu_custom_call.1} parent=0 // pred_check_branch
    %19 = sbr.rel (0) target = $region17
  $region16: #{tpu_custom_call.1} parent=0 // pred_region
    _
  $region17: #{tpu_custom_call.1} parent=0 // pred_fallthru
    _
  // Predicated region
  $region18: #{tpu_custom_call.1} parent=0 // pred_check
    _
  $region19: #{tpu_custom_call.1} parent=0 // pred_check_branch
    %21 = sbr.rel (0) target = $region21
  $region20: #{tpu_custom_call.1} parent=0 // pred_region
    _
  $region21: #{tpu_custom_call.1} parent=0 // pred_fallthru
    _
  // Predicated region
  $region22: #{tpu_custom_call.1} parent=0 // pred_check
    _
  $region23: #{tpu_custom_call.1} parent=0 // pred_check_branch
    %23 = sbr.rel (0) target = $region25
  $region24: #{tpu_custom_call.1} parent=0 // pred_region
    _
  $region25: #{tpu_custom_call.1} parent=0 // pred_fallthru
    _
  // Predicated region
  $region26: #{tpu_custom_call.1} parent=0 // pred_check
    _
  $region27: #{tpu_custom_call.1} parent=0 // pred_check_branch
    %25 = sbr.rel (0) target = $region29
  $region28: #{tpu_custom_call.1} parent=0 // pred_region
    _
  $region29: #{tpu_custom_call.1} parent=0 // pred_fallthru
    _
  %v26 = vld [vmem:[%s1] sm:$0xff]
  %v27 = vld [vmem:[%s1 + $0x8] sm:$0xff]
  %v28 = vld [vmem:[%s1 + $0x10] sm:$0xff]
  %v29 = vld [vmem:[%s1 + $0x18] sm:$0xff]
  %v30 = vld [vmem:[%s2] sm:$0x1]
  %v31 = vld [vmem:[%s3] sm:$0xff]
  %v32 = vld [vmem:[%s3 + $0x8] sm:$0xff]
  %v33 = vld [vmem:[%s3 + $0x10] sm:$0xff]
  %v34 = vld [vmem:[%s3 + $0x18] sm:$0xff]
  %v35 = vld [vmem:[%s3 + $0x20] sm:$0xff]
  %v36 = vld [vmem:[%s3 + $0x28] sm:$0xff]
  %v37 = vld [vmem:[%s3 + $0x30] sm:$0xff]
  %v38 = vld [vmem:[%s3 + $0x38] sm:$0xff]
  %v39 = vld [vmem:[%s4] sm:$0x1]
  %v40 = vld [vmem:[%s5] sm:$0xff]
  %v41 = vld [vmem:[%s5 + $0x8] sm:$0xff]
  %v42 = vld [vmem:[%s5 + $0x10] sm:$0xff]
  %v43 = vld [vmem:[%s5 + $0x18] sm:$0xff]
  %v44 = vld [vmem:[%s6] sm:$0x1]
  %v45 = vld [vmem:[%s0] sm:$0xf]
  %v46 = vunpack.c.l.bf16 %v45
  %v48 = vlaneseq
  %v49 = vshrl.u32 %v48, 7
  %v50 = vsub.s32 0, %v49
  %v51 = vrot.slane %v30, %v50
  %vm53 = vcmask 261120
  %v55 = vsel %vm53, %v46, 0
  %57 = vmatprep.subr.mxu0 0.0
  %58 = vmatpush1.msra.mxu0 %v26
  %59 = vmatprep.subr.mxu0 0.0
  %60 = vmatpush1.msra.mxu0 %v27
  %61 = vmatprep.subr.mxu0 0.0
  %62 = vmatpush1.msra.mxu0 %v28
  %63 = vmatprep.subr.mxu0 0.0
  %64 = vmatpush1.msra.mxu0 %v29
  %65 = vmatprep.subr.mxu0 0.0
  %66 = vmatpush1.msra.mxu0 0.0
  %67 = vmatprep.subr.mxu0 0.0
  %68 = vmatpush1.msra.mxu0 0.0
  %69 = vmatprep.subr.mxu0 0.0
  %70 = vmatpush1.msra.mxu0 0.0
  %71 = vmatprep.subr.mxu0 0.0
  %72 = vmatpush1.msra.mxu0 0.0
  %73 = vmatprep.subr.mxu0 0.0
  %74 = vmatpush1.msra.mxu0 0.0
  %75 = vmatprep.subr.mxu0 0.0
  %76 = vmatpush1.msra.mxu0 0.0
  %77 = vmatprep.subr.mxu0 0.0
  %78 = vmatpush1.msra.mxu0 0.0
  %79 = vmatprep.subr.mxu0 0.0
  %80 = vmatpush1.msra.mxu0 0.0
  %81 = vmatprep.subr.mxu0 0.0
  %82 = vmatpush1.msra.mxu0 0.0
  %83 = vmatprep.subr.mxu0 0.0
  %84 = vmatpush1.msra.mxu0 0.0
  %85 = vmatprep.subr.mxu0 0.0
  %86 = vmatpush1.msra.mxu0 0.0
  %87 = vmatprep.subr.mxu0 0.0
  %88 = vmatpush1.msra.mxu0 0.0
  %89 = vmatprep.subr.mxu0 0.0
  %90 = vmatpush1.msra.mxu0 0.0
  %91 = vmatprep.subr.mxu0 0.0
  %92 = vmatpush1.msra.mxu0 0.0
  %93 = vmatprep.subr.mxu0 0.0
  %94 = vmatpush1.msra.mxu0 0.0
  %95 = vmatprep.subr.mxu0 0.0
  %96 = vmatpush1.msra.mxu0 0.0
  %97 = vmatprep.subr.mxu0 0.0
  %98 = vmatpush1.msra.mxu0 0.0
  %99 = vmatprep.subr.mxu0 0.0
  %100 = vmatpush1.msra.mxu0 0.0
  %101 = vmatprep.subr.mxu0 0.0
  %102 = vmatpush1.msra.mxu0 0.0
  %103 = vmatprep.subr.mxu0 0.0
  %104 = vmatpush1.msra.mxu0 0.0
  %105 = vmatprep.subr.mxu0 0.0
  %106 = vmatpush1.msra.mxu0 0.0
  %107 = vmatprep.subr.mxu0 0.0
  %108 = vmatpush1.msra.mxu0 0.0
  %109 = vmatprep.subr.mxu0 0.0
  %110 = vmatpush1.msra.mxu0 0.0
  %111 = vmatprep.subr.mxu0 0.0
  %112 = vmatpush1.msra.mxu0 0.0
  %113 = vmatprep.subr.mxu0 0.0
  %114 = vmatpush1.msra.mxu0 0.0
  %115 = vmatprep.subr.mxu0 0.0
  %116 = vmatpush1.msra.mxu0 0.0
  %117 = vmatprep.subr.mxu0 0.0
  %118 = vmatpush1.msra.mxu0 0.0
  %119 = vmatprep.subr.mxu0 0.0
  %120 = vmatpush1.msra.mxu0 0.0
  %121 = vmatprep.mubr.f32.mxu0 0.0
  %122 = vmatmul.mubr.f32.gmra.mrb[0].mxu0 %v55
  %v123 = vpop.f32.mrb[0].mxu0
  %v124 = vadd.f32 %v51, %v123
  %v125 = vpop.f32.mrb[0].mxu0
  %126 = vdwg.mxu0
  %v127 = vmax.f32 %v124, 0.0
  %v129 = vlaneseq
  %v130 = vshrl.u32 %v129, 7
  %v131 = vsub.s32 0, %v130
  %v132 = vrot.slane %v39, %v131
  %vm134 = vcmask 523264
  %v136 = vsel %vm134, %v127, 0
  %138 = vmatprep.subr.mxu0 0.0
  %139 = vmatpush1.msra.mxu0 %v31
  %140 = vmatprep.subr.mxu0 0.0
  %141 = vmatpush1.msra.mxu0 %v32
  %142 = vmatprep.subr.mxu0 0.0
  %143 = vmatpush1.msra.mxu0 %v33
  %144 = vmatprep.subr.mxu0 0.0
  %145 = vmatpush1.msra.mxu0 %v34
  %146 = vmatprep.subr.mxu0 0.0
  %147 = vmatpush1.msra.mxu0 %v35
  %148 = vmatprep.subr.mxu0 0.0
  %149 = vmatpush1.msra.mxu0 %v36
  %150 = vmatprep.subr.mxu0 0.0
  %151 = vmatpush1.msra.mxu0 %v37
  %152 = vmatprep.subr.mxu0 0.0
  %153 = vmatpush1.msra.mxu0 %v38
  %154 = vmatprep.subr.mxu0 0.0
  %155 = vmatpush1.msra.mxu0 0.0
  %156 = vmatprep.subr.mxu0 0.0
  %157 = vmatpush1.msra.mxu0 0.0
  %158 = vmatprep.subr.mxu0 0.0
  %159 = vmatpush1.msra.mxu0 0.0
  %160 = vmatprep.subr.mxu0 0.0
  %161 = vmatpush1.msra.mxu0 0.0
  %162 = vmatprep.subr.mxu0 0.0
  %163 = vmatpush1.msra.mxu0 0.0
  %164 = vmatprep.subr.mxu0 0.0
  %165 = vmatpush1.msra.mxu0 0.0
  %166 = vmatprep.subr.mxu0 0.0
  %167 = vmatpush1.msra.mxu0 0.0
  %168 = vmatprep.subr.mxu0 0.0
  %169 = vmatpush1.msra.mxu0 0.0
  %170 = vmatprep.subr.mxu0 0.0
  %171 = vmatpush1.msra.mxu0 0.0
  %172 = vmatprep.subr.mxu0 0.0
  %173 = vmatpush1.msra.mxu0 0.0
  %174 = vmatprep.subr.mxu0 0.0
  %175 = vmatpush1.msra.mxu0 0.0
  %176 = vmatprep.subr.mxu0 0.0
  %177 = vmatpush1.msra.mxu0 0.0
  %178 = vmatprep.subr.mxu0 0.0
  %179 = vmatpush1.msra.mxu0 0.0
  %180 = vmatprep.subr.mxu0 0.0
  %181 = vmatpush1.msra.mxu0 0.0
  %182 = vmatprep.subr.mxu0 0.0
  %183 = vmatpush1.msra.mxu0 0.0
  %184 = vmatprep.subr.mxu0 0.0
  %185 = vmatpush1.msra.mxu0 0.0
  %186 = vmatprep.subr.mxu0 0.0
  %187 = vmatpush1.msra.mxu0 0.0
  %188 = vmatprep.subr.mxu0 0.0
  %189 = vmatpush1.msra.mxu0 0.0
  %190 = vmatprep.subr.mxu0 0.0
  %191 = vmatpush1.msra.mxu0 0.0
  %192 = vmatprep.subr.mxu0 0.0
  %193 = vmatpush1.msra.mxu0 0.0
  %194 = vmatprep.subr.mxu0 0.0
  %195 = vmatpush1.msra.mxu0 0.0
  %196 = vmatprep.subr.mxu0 0.0
  %197 = vmatpush1.msra.mxu0 0.0
  %198 = vmatprep.subr.mxu0 0.0
  %199 = vmatpush1.msra.mxu0 0.0
  %200 = vmatprep.subr.mxu0 0.0
  %201 = vmatpush1.msra.mxu0 0.0
  %202 = vmatprep.mubr.f32.mxu0 0.0
  %203 = vmatmul.mubr.f32.gmra.mrb[0].mxu0 %v136
  %v204 = vpop.f32.mrb[0].mxu0
  %v205 = vadd.f32 %v132, %v204
  %v206 = vpop.f32.mrb[0].mxu0
  %207 = vdwg.mxu0
  %v208 = vmax.f32 %v205, 0.0
  %v210 = vlaneseq
  %v211 = vshrl.u32 %v210, 7
  %v212 = vsub.s32 0, %v211
  %v213 = vrot.slane %v44, %v212
  %v216 = vsel %vm53, %v208, 0
  %218 = vmatprep.subr.mxu0 0.0
  %219 = vmatpush1.msra.mxu0 %v40
  %220 = vmatprep.subr.mxu0 0.0
  %221 = vmatpush1.msra.mxu0 %v41
  %222 = vmatprep.subr.mxu0 0.0
  %223 = vmatpush1.msra.mxu0 %v42
  %224 = vmatprep.subr.mxu0 0.0
  %225 = vmatpush1.msra.mxu0 %v43
  %226 = vmatprep.subr.mxu0 0.0
  %227 = vmatpush1.msra.mxu0 0.0
  %228 = vmatprep.subr.mxu0 0.0
  %229 = vmatpush1.msra.mxu0 0.0
  %230 = vmatprep.subr.mxu0 0.0
  %231 = vmatpush1.msra.mxu0 0.0
  %232 = vmatprep.subr.mxu0 0.0
  %233 = vmatpush1.msra.mxu0 0.0
  %234 = vmatprep.subr.mxu0 0.0
  %235 = vmatpush1.msra.mxu0 0.0
  %236 = vmatprep.subr.mxu0 0.0
  %237 = vmatpush1.msra.mxu0 0.0
  %238 = vmatprep.subr.mxu0 0.0
  %239 = vmatpush1.msra.mxu0 0.0
  %240 = vmatprep.subr.mxu0 0.0
  %241 = vmatpush1.msra.mxu0 0.0
  %242 = vmatprep.subr.mxu0 0.0
  %243 = vmatpush1.msra.mxu0 0.0
  %244 = vmatprep.subr.mxu0 0.0
  %245 = vmatpush1.msra.mxu0 0.0
  %246 = vmatprep.subr.mxu0 0.0
  %247 = vmatpush1.msra.mxu0 0.0
  %248 = vmatprep.subr.mxu0 0.0
  %249 = vmatpush1.msra.mxu0 0.0
  %250 = vmatprep.subr.mxu0 0.0
  %251 = vmatpush1.msra.mxu0 0.0
  %252 = vmatprep.subr.mxu0 0.0
  %253 = vmatpush1.msra.mxu0 0.0
  %254 = vmatprep.subr.mxu0 0.0
  %255 = vmatpush1.msra.mxu0 0.0
  %256 = vmatprep.subr.mxu0 0.0
  %257 = vmatpush1.msra.mxu0 0.0
  %258 = vmatprep.subr.mxu0 0.0
  %259 = vmatpush1.msra.mxu0 0.0
  %260 = vmatprep.subr.mxu0 0.0
  %261 = vmatpush1.msra.mxu0 0.0
  %262 = vmatprep.subr.mxu0 0.0
  %263 = vmatpush1.msra.mxu0 0.0
  %264 = vmatprep.subr.mxu0 0.0
  %265 = vmatpush1.msra.mxu0 0.0
  %266 = vmatprep.subr.mxu0 0.0
  %267 = vmatpush1.msra.mxu0 0.0
  %268 = vmatprep.subr.mxu0 0.0
  %269 = vmatpush1.msra.mxu0 0.0
  %270 = vmatprep.subr.mxu0 0.0
  %271 = vmatpush1.msra.mxu0 0.0
  %272 = vmatprep.subr.mxu0 0.0
  %273 = vmatpush1.msra.mxu0 0.0
  %274 = vmatprep.subr.mxu0 0.0
  %275 = vmatpush1.msra.mxu0 0.0
  %276 = vmatprep.subr.mxu0 0.0
  %277 = vmatpush1.msra.mxu0 0.0
  %278 = vmatprep.subr.mxu0 0.0
  %279 = vmatpush1.msra.mxu0 0.0
  %280 = vmatprep.subr.mxu0 0.0
  %281 = vmatpush1.msra.mxu0 0.0
  %282 = vmatprep.mubr.f32.mxu0 0.0
  %283 = vmatmul.mubr.f32.gmra.mrb[0].mxu0 %v216
  %v284 = vpop.f32.mrb[0].mxu0
  %v285 = vadd.f32 %v213, %v284
  %v286 = vpop.f32.mrb[0].mxu0
  %287 = vdwg.mxu0
  %vm288 = vcmask 15360
  %289 = vst.msk [vmem:[%s7] sm:$0xff] %vm288, %v285
  // Predicated region
  $region30: #{tpu_custom_call.1} parent=0 // pred_check
    _
  $region31: #{tpu_custom_call.1} parent=0 // pred_check_branch
    %291 = sbr.rel (0) target = $region33
  $region32: #{tpu_custom_call.1} parent=0 // pred_region
    _
  $region33: #{tpu_custom_call.1} parent=0 // pred_fallthru
    _
  // Predicated region
  $region34: #{tpu_custom_call.1} parent=0 // pred_check
    _
  $region35: #{tpu_custom_call.1} parent=0 // pred_check_branch
    %293 = sbr.rel (0) target = $region37
  $region36: #{tpu_custom_call.1} parent=0 // pred_region
    _
  $region37: #{tpu_custom_call.1} parent=0 // pred_fallthru
    _

</llo_original>
